<compile_context>
chip_gen: v7x
topology: tpu7x:2x2x1
jax: 0.10.0
libtpu: 0.0.40
codegen_flags: <defaults>
</compile_context>

<pallas_src>
import functools

import jax
import jax.numpy as jnp
import numpy as np
from jax.experimental import pallas as pl
from jax.experimental.pallas import tpu as pltpu

LOSS_MULTIPLIER = 100.0
_LANE = 128
_IN_VMEM_BUDGET = 4 * 1024 * 1024   # bytes for 2 inputs x 2 pipeline buffers
_MAX_TP = 16 * 1024                 # sanity cap on lanes per tile


def _round_up(x, m):
    return (x + m - 1) // m * m


def _l2_psum_kernel(x_ref, t_ref, out_ref, *, scale, num_valid, tile_p):
    """x_ref/t_ref: [T2, tp] native-dtype VMEM tiles (primaries on lanes).

    out_ref: [1, tp] f32. Writes scale * sum_over_rows((x - t)^2) per lane,
    i.e. the per-primary MSE over (time, 2 coords) already multiplied by the
    loss multiplier (scale = 100 / (T*2)). Lanes >= num_valid (ragged last
    tile / undefined out-of-bounds columns) are forced to 0.
    """
    diff = x_ref[...].astype(jnp.float32) - t_ref[...].astype(jnp.float32)
    per_lane = jnp.sum(diff * diff, axis=0, keepdims=True) * scale    # [1, tp]
    lane = pl.program_id(0) * tile_p + jax.lax.broadcasted_iota(
        jnp.int32, per_lane.shape, 1)
    out_ref[...] = jnp.where(lane < num_valid, per_lane, 0.0)


def l2_loss(inputs, targets, batch_split, keep_batch_dim=False, col_wt=0.0):
    """Pallas implementation of L2Loss.forward (default col_wt=0.0 path)."""
    # TODO(synk): CollisionLoss branch (col_wt > 0) not implemented; the
    # default module config (col_wt=0.0) never executes it.
    assert col_wt == 0.0

    batch_split = jnp.asarray(batch_split)
    P = int(batch_split.shape[0]) - 1
    if P <= 0:
        return jnp.zeros((0,), jnp.float32) if keep_batch_dim else jnp.float32(0.0)

    primaries = batch_split[:-1]

    # Gather primary tracks (native dtype) and put P on the lane axis:
    #   [T, P, 2] -> [T, 2, P] -> [T*2, P].  No wrapper-side pad.
    x = inputs[:, primaries, :2]                       # [T, P, 2]
    t = targets[:, primaries, :]                       # [T, P, 2]
    T, _, C = x.shape
    T2 = T * C
    x2d = jnp.transpose(x, (0, 2, 1)).reshape(T2, P)
    t2d = jnp.transpose(t, (0, 2, 1)).reshape(T2, P)

    itemsize = np.dtype(x2d.dtype).itemsize
    # Lane tile width from the VMEM byte budget.
    tp = _IN_VMEM_BUDGET // (4 * T2 * itemsize)
    tp = max(_LANE, min(_MAX_TP, (tp // _LANE) * _LANE))
    p_ceil = _round_up(P, _LANE)
    tp = min(tp, p_ceil)
    # Keep >= 2 grid steps when possible so v7x megacore can shard the
    # "parallel" axis across both TensorCores (negligible cost on 1-TC chips).
    if p_ceil >= 2 * _LANE:
        tp = min(tp, _round_up((p_ceil + 1) // 2, _LANE))

    n_tiles = pl.cdiv(P, tp)
    scale = np.float32(LOSS_MULTIPLIER / (T * C))

    per_primary = pl.pallas_call(
        functools.partial(_l2_psum_kernel, scale=scale, num_valid=P, tile_p=tp),
        out_shape=jax.ShapeDtypeStruct((1, n_tiles * tp), jnp.float32),
        grid=(n_tiles,),
        in_specs=[
            pl.BlockSpec((T2, tp), lambda i: (0, i)),
            pl.BlockSpec((T2, tp), lambda i: (0, i)),
        ],
        out_specs=pl.BlockSpec((1, tp), lambda i: (0, i)),
        compiler_params=pltpu.CompilerParams(
            dimension_semantics=("parallel",),
        ),
    )(x2d, t2d)[0, :P]                                  # [P], already *100/(T*2)

    if keep_batch_dim:
        # loss.mean(dim=0).mean(dim=1) * 100
        return per_primary
    # torch.mean(loss) * 100  ==  mean over primaries of the per-primary means
    return jnp.sum(per_primary) / P


def _reference_l2_loss(inputs, targets, batch_split, keep_batch_dim=False):
    primaries = np.asarray(batch_split)[:-1]
    x = np.asarray(inputs, dtype=np.float32)[:, primaries, :2]
    t = np.asarray(targets, dtype=np.float32)[:, primaries, :]
    loss = (x - t) ** 2
    if keep_batch_dim:
        return loss.mean(axis=0).mean(axis=1) * LOSS_MULTIPLIER
    return loss.mean() * LOSS_MULTIPLIER


if __name__ == "__main__":
    key = jax.random.PRNGKey(0)
    k1, k2, k3, k4 = jax.random.split(key, 4)

    # --- small shapes consistent with the module ---
    T, N, D = 8, 10, 5                      # pred_length, num_tracks, coord-dim
    batch_split = np.array([0, 3, 7, 10], dtype=np.int32)   # 3 scenes -> P = 3

    inputs = jax.random.normal(k1, (T, N, D), dtype=jnp.float32)
    targets = jax.random.normal(k2, (T, N, 2), dtype=jnp.float32)

    # f32 inputs, both reduction modes
    out = jax.block_until_ready(l2_loss(inputs, targets, batch_split, keep_batch_dim=False))
    ref = _reference_l2_loss(inputs, targets, batch_split, keep_batch_dim=False)
    np.testing.assert_allclose(np.asarray(out), ref, rtol=1e-5, atol=1e-5)

    out_b = jax.block_until_ready(l2_loss(inputs, targets, batch_split, keep_batch_dim=True))
    ref_b = _reference_l2_loss(inputs, targets, batch_split, keep_batch_dim=True)
    np.testing.assert_allclose(np.asarray(out_b), ref_b, rtol=1e-5, atol=1e-5)

    # bf16 inputs (native dtype flows into the kernel; upcast happens in-VMEM)
    inputs_bf = inputs.astype(jnp.bfloat16)
    targets_bf = targets.astype(jnp.bfloat16)
    out_bf = jax.block_until_ready(l2_loss(inputs_bf, targets_bf, batch_split))
    ref_bf = _reference_l2_loss(inputs_bf.astype(jnp.float32),
                                targets_bf.astype(jnp.float32), batch_split)
    np.testing.assert_allclose(np.asarray(out_bf), ref_bf, rtol=1e-4, atol=1e-4)

    # Larger P, not a multiple of 128 -> exercises multi-tile grid and the
    # in-kernel ragged-lane mask (no wrapper pad).
    N2 = 300
    batch_split2 = np.arange(0, N2 + 1, 2, dtype=np.int32)   # 150 primaries
    inputs2 = jax.random.normal(k3, (T, N2, D), dtype=jnp.float32)
    targets2 = jax.random.normal(k4, (T, N2, 2), dtype=jnp.float32)

    out2 = jax.block_until_ready(l2_loss(inputs2, targets2, batch_split2, keep_batch_dim=True))
    ref2 = _reference_l2_loss(inputs2, targets2, batch_split2, keep_batch_dim=True)
    np.testing.assert_allclose(np.asarray(out2), ref2, rtol=1e-5, atol=1e-5)

    out2s = jax.block_until_ready(l2_loss(inputs2, targets2, batch_split2, keep_batch_dim=False))
    ref2s = _reference_l2_loss(inputs2, targets2, batch_split2, keep_batch_dim=False)
    np.testing.assert_allclose(np.asarray(out2s), ref2s, rtol=1e-5, atol=1e-5)

    print("KERNEL_OK")
</pallas_src>

<mosaic_0001>
module attributes {stable_mosaic.version = 11 : i64} {
  func.func @_l2_psum_kernel(%arg0: i32, %arg1: memref<16x128xf32, #tpu.memory_space<vmem>>, %arg2: memref<16x128xf32, #tpu.memory_space<vmem>>, %arg3: memref<1x128xf32, #tpu.memory_space<vmem>>) attributes {dimension_semantics = [#tpu.dimension_semantics<parallel>], iteration_bounds = array<i64: 1>, scalar_prefetch = 0 : i64, scratch_operands = 0 : i64, tpu.core_type = #tpu.core_type<tc>, window_params = [{transform_indices = @transform_0, window_bounds = array<i64: 16, 128>}, {transform_indices = @transform_1, window_bounds = array<i64: 16, 128>}, {transform_indices = @transform_2, window_bounds = array<i64: 1, 128>}]} {
    %c0 = arith.constant 0 : index
    %c0_0 = arith.constant 0 : index
    %0 = vector.load %arg1[%c0, %c0_0] : memref<16x128xf32, #tpu.memory_space<vmem>>, vector<16x128xf32>
    %c0_1 = arith.constant 0 : index
    %c0_2 = arith.constant 0 : index
    %1 = vector.load %arg2[%c0_1, %c0_2] : memref<16x128xf32, #tpu.memory_space<vmem>>, vector<16x128xf32>
    %2 = arith.subf %0, %1 : vector<16x128xf32>
    %3 = arith.mulf %2, %2 : vector<16x128xf32>
    %cst = arith.constant dense<0.000000e+00> : vector<128xf32>
    %4 = vector.multi_reduction <add>, %3, %cst [0] : vector<16x128xf32> to vector<128xf32>
    %5 = vector.shape_cast %4 : vector<128xf32> to vector<1x128xf32>
    %cst_3 = arith.constant 6.250000e+00 : f32
    %6 = vector.broadcast %cst_3 : f32 to vector<1x128xf32>
    %7 = arith.mulf %5, %6 : vector<1x128xf32>
    %c128_i32 = arith.constant 128 : i32
    %8 = arith.muli %arg0, %c128_i32 : i32
    %9 = tpu.iota {dimensions = array<i32: 1>} : vector<1x128xi32>
    %10 = vector.broadcast %8 : i32 to vector<1x128xi32>
    %11 = arith.addi %10, %9 : vector<1x128xi32>
    %c3_i32 = arith.constant 3 : i32
    %12 = vector.broadcast %c3_i32 : i32 to vector<1x128xi32>
    %13 = arith.cmpi slt, %11, %12 : vector<1x128xi32>
    %cst_4 = arith.constant 0.000000e+00 : f32
    %14 = vector.broadcast %cst_4 : f32 to vector<1x128xf32>
    %15 = arith.select %13, %7, %14 : vector<1x128xi1>, vector<1x128xf32>
    %c0_5 = arith.constant 0 : index
    %c0_6 = arith.constant 0 : index
    %16 = vector.load %arg3[%c0_5, %c0_6] : memref<1x128xf32, #tpu.memory_space<vmem>>, vector<1x128xf32>
    tpu.vector_store %arg3[%c0_5, %c0_6], %15 {strides = array<i32>} : memref<1x128xf32, #tpu.memory_space<vmem>>, vector<1x128xf32>,
    return
  }
  func.func @transform_0(%arg0: i32) -> (i32, i32) {
    %c0_i32 = arith.constant 0 : i32
    %c0_i32_0 = arith.constant 0 : i32
    return %c0_i32, %arg0 : i32, i32
  }
  func.func @transform_1(%arg0: i32) -> (i32, i32) {
    %c0_i32 = arith.constant 0 : i32
    %c0_i32_0 = arith.constant 0 : i32
    return %c0_i32, %arg0 : i32, i32
  }
  func.func @transform_2(%arg0: i32) -> (i32, i32) {
    %c0_i32 = arith.constant 0 : i32
    %c0_i32_0 = arith.constant 0 : i32
    return %c0_i32, %arg0 : i32, i32
  }
}

</mosaic_0001>

<llo_original>
// kernel: tpu_custom_call.1
$region0: #{tpu_custom_call.1}
  #allocation0 [shape = 'u32[]', space=smem, size = 0x4, offset = 0x4, fixed_abs, tag = 'smem constant byte address 0x4 - core index']
  #allocation1 [shape = 'u32[144,128]{1,0:T(1,128)}', space=vmem, size = 0x12000, scoped, tag = 'internal scratch']
  %s0 = inlined_call_operand.vmem [shape: f32[16,3], index: 0, kind: input, shape index: {}]
  %s1 = inlined_call_operand.vmem [shape: f32[16,3], index: 1, kind: input, shape index: {}]
  %s2 = inlined_call_operand.hbm [shape: f32[1,128], index: 2, kind: output, shape index: {}]
  %s3 = sld [smem:[#allocation0]]
  $region18: #{tpu_custom_call.1} parent=0
    _
  %s5 = ssub.s32 1, %s3
  %s6 = scalar_select 0, %s5, %s3
  $region1: #{tpu_custom_call.1} parent=0
    #allocation2 [shape = 'u8[512]{0}', space=vmem, size = 0x400, scoped, tag = 'output window, operand 0, single buffered']
    #allocation3 [shape = 's32[1]{0}', space=sflag, size = 0x4, scoped, tag = 'scoped memory for tpu_custom_call.1']
    %7 = vsyncpa [#allocation3], 0
    // Predicated region
    $region2: #{tpu_custom_call.1} parent=1 // pred_check
      _
    $region3: #{tpu_custom_call.1} parent=1 // pred_check_branch
      %9 = sbr.rel (0) target = $region5
    $region4: #{tpu_custom_call.1} parent=1 // pred_region
      _
    $region5: #{tpu_custom_call.1} parent=1 // pred_fallthru
      _
    // Predicated region
    $region6: #{tpu_custom_call.1} parent=1 // pred_check
      _
    $region7: #{tpu_custom_call.1} parent=1 // pred_check_branch
      %11 = sbr.rel (0) target = $region9
    $region8: #{tpu_custom_call.1} parent=1 // pred_region
      _
    $region9: #{tpu_custom_call.1} parent=1 // pred_fallthru
      _
    %v12 = vld [vmem:[%s0] sm:$0xff]
    %v13 = vld [vmem:[%s0 + $0x8] sm:$0xff]
    %v14 = vld [vmem:[%s1] sm:$0xff]
    %v15 = vld [vmem:[%s1 + $0x8] sm:$0xff]
    %v16 = vsub.f32 %v12, %v14
    %v17 = vsub.f32 %v13, %v15
    %v18 = vmul.f32 %v16, %v16
    %v19 = vmul.f32 %v17, %v17
    %v20 = vadd.f32 %v18, %v19
    %v21 = vrot.slane %v20, 4
    %v22 = vadd.f32 %v20, %v21
    %v23 = vrot.slane %v22, 2
    %v24 = vadd.f32 %v22, %v23
    %v25 = vrot.slane %v24, 1
    %v26 = vadd.f32 %v24, %v25
    %v27 = vmul.f32 %v26, 6.25
    %s28 = smul.u32 0, 128
    %v29 = vlaneseq
    %v30 = vand.u32 %v29, 127
    %v31 = vstv %s28
    %v32 = vadd.s32 %v31, %v30
    %vm33 = vcmp.lt.s32.totalorder %v32, 3
    %v34 = vsel %vm33, %v27, 0.0
    %35 = vst [vmem:[#allocation2] sm:$0x1] %v34
    // Predicated region
    $region10: #{tpu_custom_call.1} parent=1 // pred_check
      _
    $region11: #{tpu_custom_call.1} parent=1 // pred_check_branch
      %37 = sbr.rel (0) target = $region13
    $region12: #{tpu_custom_call.1} parent=1 // pred_region
      %s39 = ssub.s32 16, 16
      %40 = vsyncadd [#allocation3], %s39
      %s42 = sshll.u32 [#allocation2], 4
      %s43 = int_to_ptr.vmem [resolvable:$true] %s42
      %45 = dma.vmem_to_hbm [thread:$0]  %s43, 16, %s2, [#allocation3]
    $region13: #{tpu_custom_call.1} parent=1 // pred_fallthru
      _
    // Predicated region
    $region14: #{tpu_custom_call.1} parent=1 // pred_check
      _
    $region15: #{tpu_custom_call.1} parent=1 // pred_check_branch
      %47 = sbr.rel (0) target = $region17
    $region16: #{tpu_custom_call.1} parent=1 // pred_region
      %48 = dma.done [#allocation3], 16
    $region17: #{tpu_custom_call.1} parent=1 // pred_fallthru
      _
    %49 = vsyncpa [#allocation3], 1

</llo_original>
